<compile_context>
chip_gen: v7x
topology: tpu7x:2x2x1
jax: 0.10.0
libtpu: 0.0.40
codegen_flags: <defaults>
</compile_context>

<pallas_src>
import math

import jax
import jax.numpy as jnp
from jax import lax
from jax.experimental import pallas as pl
from jax.experimental.pallas import tpu as pltpu

EPS = 1e-5


# ---------------------------------------------------------------------------
# VMEM budgeting
# ---------------------------------------------------------------------------

def _vmem_capacity_bytes():
    """Per-core VMEM capacity; conservative (v7x) fallback if unavailable."""
    try:
        cap = int(pltpu.get_tpu_info().vmem_capacity_bytes)
        if cap > 0:
            return cap
    except Exception:
        pass
    return 64 << 20  # v7x per-TensorCore VMEM (the binding constraint)


def _pick_tile(s_pad, c, itemsize, target_bytes):
    """Largest multiple-of-128 divisor of s_pad with c*tile*itemsize <= target."""
    n128 = s_pad // 128
    bytes_per_128 = max(1, c * itemsize * 128)
    max_d = max(1, int(target_bytes // bytes_per_128))
    best = 1
    for d in range(1, min(n128, max_d) + 1):
        if n128 % d == 0:
            best = d
    return best * 128


# ---------------------------------------------------------------------------
# Pallas kernels
# ---------------------------------------------------------------------------

def _make_stats_kernel(ts, inv_n, eps):
    """Phase 1: streamed per-(n,c) sum/sumsq over S tiles -> fused scale/shift.

    Accumulates lane-wide (C, 128) f32 partials (pure VPU adds per 128-lane
    segment); the cross-lane reduce + rsqrt run once in the final grid step.
    """
    nseg = ts // 128

    def kernel(x_ref, scale_ref, shift_ref, sum_sc, sumsq_sc):
        s = pl.program_id(1)

        @pl.when(s == 0)
        def _():
            sum_sc[...] = jnp.zeros_like(sum_sc)
            sumsq_sc[...] = jnp.zeros_like(sumsq_sc)

        def body(seg, carry):
            off = pl.multiple_of(seg * 128, 128)
            xb = x_ref[0, :, pl.ds(off, 128)].astype(jnp.float32)   # (C, 128)
            sum_sc[...] += xb
            sumsq_sc[...] += xb * xb
            return carry

        lax.fori_loop(0, nseg, body, 0)

        @pl.when(s == pl.num_programs(1) - 1)
        def _():
            total = jnp.sum(sum_sc[...], axis=-1, keepdims=True)      # (C, 1)
            totalsq = jnp.sum(sumsq_sc[...], axis=-1, keepdims=True)  # (C, 1)
            mean = total * inv_n
            # E[x^2] - mean^2 (documented f32 precision tradeoff vs two-pass).
            var = jnp.maximum(totalsq * inv_n - mean * mean, 0.0)
            rstd = lax.rsqrt(var + eps)
            scale_ref[0] = rstd
            shift_ref[0] = -mean * rstd

    return kernel


def _apply_kernel(x_ref, gamma_ref, beta_ref, scale_ref, shift_ref, o_ref):
    """Phase 2: out = (x*scale + shift) * (1 + gamma) + beta (per element)."""
    x = x_ref[0].astype(jnp.float32)                                  # (C, TS)
    g = gamma_ref[0].astype(jnp.float32)
    b = beta_ref[0].astype(jnp.float32)
    xhat = x * scale_ref[0] + shift_ref[0]                            # (C,1) bcast
    o_ref[0] = (xhat * (1.0 + g) + b).astype(o_ref.dtype)


def _make_fused_kernel(inv_n, eps):
    """Single-pass path: stats + modulation on a whole (C, S) per-sample slab."""

    def kernel(x_ref, gamma_ref, beta_ref, o_ref):
        x = x_ref[0].astype(jnp.float32)                              # (C, S)
        mean = jnp.sum(x, axis=-1, keepdims=True) * inv_n
        ex2 = jnp.sum(x * x, axis=-1, keepdims=True) * inv_n
        var = jnp.maximum(ex2 - mean * mean, 0.0)
        rstd = lax.rsqrt(var + eps)
        shift = -mean * rstd
        g = gamma_ref[0].astype(jnp.float32)
        b = beta_ref[0].astype(jnp.float32)
        o_ref[0] = ((x * rstd + shift) * (1.0 + g) + b).astype(o_ref.dtype)

    return kernel


# ---------------------------------------------------------------------------
# Wrapper: InstanceNorm2d(x) * (1 + gamma) + beta
# ---------------------------------------------------------------------------

def instance_norm_spade_apply(x_nchw, gamma, beta, *, eps=EPS, s_tile=None,
                              force_two_phase=False):
    N, C, H, W = x_nchw.shape
    S = H * W
    S_pad = -(-S // 128) * 128                 # lane-pad; zeros don't affect sums
    dtype = x_nchw.dtype
    itemsize = jnp.dtype(dtype).itemsize

    x = x_nchw.reshape(N, C, S)
    g = gamma.astype(dtype).reshape(N, C, S)   # match activation dtype (bw win)
    b = beta.astype(dtype).reshape(N, C, S)
    if S_pad != S:
        pad = ((0, 0), (0, 0), (0, S_pad - S))
        x, g, b = jnp.pad(x, pad), jnp.pad(g, pad), jnp.pad(b, pad)

    # Generation-aware VMEM budget (v7x: 64 MiB/TC; v5e/v6e: 128 MiB).
    budget = int(_vmem_capacity_bytes() * 3 // 4)
    inv_n = 1.0 / S                            # true S, not padded

    slab_bytes = C * S_pad * itemsize
    f32_slab = C * S_pad * 4
    # 4 streamed arrays x 2 buffers + f32 temporaries inside the kernel body.
    fused_estimate = 8 * slab_bytes + 2 * f32_slab
    use_fused = (not force_two_phase) and (s_tile is None) and \
        (fused_estimate <= budget)

    if use_fused:
        slab_spec = pl.BlockSpec((1, C, S_pad), lambda i: (i, 0, 0))
        out = pl.pallas_call(
            _make_fused_kernel(inv_n, eps),
            out_shape=jax.ShapeDtypeStruct((N, C, S_pad), dtype),
            grid_spec=pltpu.PrefetchScalarGridSpec(
                num_scalar_prefetch=0,
                grid=(N,),
                in_specs=[slab_spec, slab_spec, slab_spec],
                out_specs=slab_spec),
            compiler_params=pltpu.CompilerParams(
                dimension_semantics=("parallel",),
                vmem_limit_bytes=budget),
        )(x, g, b)
        return out[:, :, :S].reshape(N, C, H, W)

    # ---- two-phase streamed path ----
    if s_tile is not None:
        assert s_tile % 128 == 0 and S_pad % s_tile == 0, \
            "s_tile must be a multiple of 128 dividing the padded H*W"
        ts_apply = ts_stats = s_tile
    else:
        # Apply kernel streams x, gamma, beta, out (4 arrays, double-buffered).
        ts_apply = _pick_tile(S_pad, C, itemsize, budget // 9)
        # Stats kernel streams only x: give it a much larger tile (near pure BW).
        ts_stats = _pick_tile(S_pad, C, itemsize, min(budget // 3, 16 << 20))

    # Phase 1: per-(n, c) fused scale/shift (f32 accumulation).
    ns_stats = S_pad // ts_stats
    scale, shift = pl.pallas_call(
        _make_stats_kernel(ts_stats, inv_n, eps),
        out_shape=(jax.ShapeDtypeStruct((N, C, 1), jnp.float32),
                   jax.ShapeDtypeStruct((N, C, 1), jnp.float32)),
        grid_spec=pltpu.PrefetchScalarGridSpec(
            num_scalar_prefetch=0,
            grid=(N, ns_stats),
            in_specs=[pl.BlockSpec((1, C, ts_stats), lambda i, s: (i, 0, s))],
            out_specs=(pl.BlockSpec((1, C, 1), lambda i, s: (i, 0, 0)),
                       pl.BlockSpec((1, C, 1), lambda i, s: (i, 0, 0))),
            scratch_shapes=[pltpu.VMEM((C, 128), jnp.float32),
                            pltpu.VMEM((C, 128), jnp.float32)]),
        compiler_params=pltpu.CompilerParams(
            dimension_semantics=("parallel", "arbitrary"),
            vmem_limit_bytes=budget),
    )(x)

    # Phase 2: elementwise modulation; both grid axes independent (parallel).
    ns_apply = S_pad // ts_apply
    tile_spec = pl.BlockSpec((1, C, ts_apply), lambda i, s: (i, 0, s))
    vec_spec = pl.BlockSpec((1, C, 1), lambda i, s: (i, 0, 0))
    out = pl.pallas_call(
        _apply_kernel,
        out_shape=jax.ShapeDtypeStruct((N, C, S_pad), dtype),
        grid_spec=pltpu.PrefetchScalarGridSpec(
            num_scalar_prefetch=0,
            grid=(N, ns_apply),
            in_specs=[tile_spec, tile_spec, tile_spec, vec_spec, vec_spec],
            out_specs=tile_spec),
        compiler_params=pltpu.CompilerParams(
            dimension_semantics=("parallel", "parallel"),
            vmem_limit_bytes=budget),
    )(x, g, b, scale, shift)

    return out[:, :, :S].reshape(N, C, H, W)


# ---------------------------------------------------------------------------
# Conv path (XLA) + full forward
# ---------------------------------------------------------------------------

def _conv3x3(x, w, b):
    out = lax.conv_general_dilated(
        x, w, window_strides=(1, 1), padding=((1, 1), (1, 1)),
        dimension_numbers=("NCHW", "OIHW", "NCHW"))
    return out + b[None, :, None, None]


def _nearest_resize(prior, H, W):
    """Matches torch.nn.functional.interpolate(..., mode='nearest')."""
    _, _, h, w = prior.shape
    rows = jnp.floor(jnp.arange(H, dtype=jnp.float32) * (h / H)).astype(jnp.int32)
    cols = jnp.floor(jnp.arange(W, dtype=jnp.float32) * (w / W)).astype(jnp.int32)
    return prior[:, :, rows[:, None], cols[None, :]]


def spade2d(x, prior, params, *, s_tile=None, force_two_phase=False):
    """SPADE2D forward. Conv path in XLA; norm+modulation in Pallas."""
    N, C, H, W = x.shape
    latent = _nearest_resize(prior, H, W)
    latent = jax.nn.relu(_conv3x3(latent, params["w_conv"], params["b_conv"]))
    # Emit gamma/beta in the activation dtype so the Pallas apply streams the
    # minimum number of bytes (XLA fuses the cast into the conv epilogue).
    gamma = _conv3x3(latent, params["w_gamma"], params["b_gamma"]).astype(x.dtype)
    beta = _conv3x3(latent, params["w_beta"], params["b_beta"]).astype(x.dtype)
    return instance_norm_spade_apply(x, gamma, beta, s_tile=s_tile,
                                     force_two_phase=force_two_phase)


# ---------------------------------------------------------------------------
# Pure-JAX reference (PyTorch SPADE2D semantics) + synthetic params
# ---------------------------------------------------------------------------

def spade2d_reference(x, prior, params):
    latent = _nearest_resize(prior, x.shape[2], x.shape[3])
    latent = jax.nn.relu(_conv3x3(latent, params["w_conv"], params["b_conv"]))
    gamma = _conv3x3(latent, params["w_gamma"], params["b_gamma"])
    beta = _conv3x3(latent, params["w_beta"], params["b_beta"])
    mean = jnp.mean(x, axis=(2, 3), keepdims=True)
    var = jnp.var(x, axis=(2, 3), keepdims=True)   # biased, like InstanceNorm2d
    xhat = (x - mean) / jnp.sqrt(var + EPS)
    return xhat * (1.0 + gamma) + beta


def init_params(key, in_features, prior_channel):
    half = in_features // 2
    ks = jax.random.split(key, 6)

    def conv_init(kw, kb, out_c, in_c, k=3):
        bound = 1.0 / math.sqrt(in_c * k * k)
        w = jax.random.uniform(kw, (out_c, in_c, k, k), jnp.float32, -bound, bound)
        b = jax.random.uniform(kb, (out_c,), jnp.float32, -bound, bound)
        return w, b

    w_conv, b_conv = conv_init(ks[0], ks[1], half, prior_channel)
    w_gamma, b_gamma = conv_init(ks[2], ks[3], in_features, half)
    w_beta, b_beta = conv_init(ks[4], ks[5], in_features, half)
    return dict(w_conv=w_conv, b_conv=b_conv, w_gamma=w_gamma, b_gamma=b_gamma,
                w_beta=w_beta, b_beta=b_beta)


if __name__ == "__main__":
    key = jax.random.PRNGKey(0)
    k_x, k_p, k_w, k_x2, k_p2 = jax.random.split(key, 5)

    N, C, H, W = 2, 8, 16, 16     # in_features = 8
    P, Hp, Wp = 4, 8, 8           # prior_channel = 4

    x = jax.random.normal(k_x, (N, C, H, W), jnp.float32)
    prior = jax.random.normal(k_p, (N, P, Hp, Wp), jnp.float32)
    params = init_params(k_w, C, P)
    ref = spade2d_reference(x, prior, params)

    # Case 1: default path (S divisible by 128 -> fused single-pass kernel).
    out = jax.block_until_ready(spade2d(x, prior, params))
    assert out.shape == (N, C, H, W)
    assert jnp.allclose(out, ref, atol=1e-4, rtol=1e-4), "fused path mismatch"

    # Case 2: force the two-phase streamed path with 2 S-tiles (stats + apply).
    out2p = jax.block_until_ready(spade2d(x, prior, params, s_tile=128))
    assert jnp.allclose(out2p, ref, atol=1e-4, rtol=1e-4), "two-phase mismatch"

    # Case 3: two-phase with automatic tile selection (exercises _pick_tile and
    # the multi-segment lane-partial accumulation).
    out2a = jax.block_until_ready(spade2d(x, prior, params, force_two_phase=True))
    assert jnp.allclose(out2a, ref, atol=1e-4, rtol=1e-4), "auto two-phase mismatch"

    # Case 4: spatial size not divisible by 128 -> zero-padded lane dimension.
    N2, H2, W2 = 1, 12, 12
    x2 = jax.random.normal(k_x2, (N2, C, H2, W2), jnp.float32)
    prior2 = jax.random.normal(k_p2, (N2, P, 6, 6), jnp.float32)
    ref2 = spade2d_reference(x2, prior2, params)
    outp = jax.block_until_ready(spade2d(x2, prior2, params))
    assert jnp.allclose(outp, ref2, atol=1e-4, rtol=1e-4), "padded fused mismatch"
    outps = jax.block_until_ready(spade2d(x2, prior2, params, s_tile=128))
    assert jnp.allclose(outps, ref2, atol=1e-4, rtol=1e-4), "padded streamed mismatch"

    print("KERNEL_OK")
</pallas_src>

<mosaic_0001>
module attributes {stable_mosaic.version = 11 : i64} {
  func.func @kernel(%arg0: i32, %arg1: memref<1x8x256xf32, #tpu.memory_space<vmem>>, %arg2: memref<1x8x256xf32, #tpu.memory_space<vmem>>, %arg3: memref<1x8x256xf32, #tpu.memory_space<vmem>>, %arg4: memref<1x8x256xf32, #tpu.memory_space<vmem>>) attributes {dimension_semantics = [#tpu.dimension_semantics<parallel>], iteration_bounds = array<i64: 2>, scalar_prefetch = 0 : i64, scratch_operands = 0 : i64, tpu.core_type = #tpu.core_type<tc>, window_params = [{transform_indices = @transform_0, window_bounds = array<i64: 1, 8, 256>}, {transform_indices = @transform_1, window_bounds = array<i64: 1, 8, 256>}, {transform_indices = @transform_2, window_bounds = array<i64: 1, 8, 256>}, {transform_indices = @transform_3, window_bounds = array<i64: 1, 8, 256>}]} {
    %c0 = arith.constant 0 : index
    %c0_0 = arith.constant 0 : index
    %c0_1 = arith.constant 0 : index
    %0 = vector.load %arg1[%c0, %c0_0, %c0_1] : memref<1x8x256xf32, #tpu.memory_space<vmem>>, vector<1x8x256xf32>
    %1 = vector.shape_cast %0 : vector<1x8x256xf32> to vector<8x256xf32>
    %cst = arith.constant dense<0.000000e+00> : vector<8xf32>
    %2 = vector.multi_reduction <add>, %1, %cst [1] : vector<8x256xf32> to vector<8xf32>
    %3 = vector.shape_cast %2 : vector<8xf32> to vector<8x1xf32>
    %cst_2 = arith.constant 3.906250e-03 : f32
    %4 = vector.broadcast %cst_2 : f32 to vector<8x1xf32>
    %5 = arith.mulf %3, %4 : vector<8x1xf32>
    %6 = arith.mulf %1, %1 : vector<8x256xf32>
    %cst_3 = arith.constant dense<0.000000e+00> : vector<8xf32>
    %7 = vector.multi_reduction <add>, %6, %cst_3 [1] : vector<8x256xf32> to vector<8xf32>
    %8 = vector.shape_cast %7 : vector<8xf32> to vector<8x1xf32>
    %cst_4 = arith.constant 3.906250e-03 : f32
    %9 = vector.broadcast %cst_4 : f32 to vector<8x1xf32>
    %10 = arith.mulf %8, %9 : vector<8x1xf32>
    %11 = arith.mulf %5, %5 : vector<8x1xf32>
    %12 = arith.subf %10, %11 : vector<8x1xf32>
    %cst_5 = arith.constant 0.000000e+00 : f32
    %13 = vector.broadcast %cst_5 : f32 to vector<8x1xf32>
    %14 = arith.maximumf %12, %13 : vector<8x1xf32>
    %cst_6 = arith.constant 9.99999974E-6 : f32
    %15 = vector.broadcast %cst_6 : f32 to vector<8x1xf32>
    %16 = arith.addf %14, %15 : vector<8x1xf32>
    %17 = math.rsqrt %16 : vector<8x1xf32>
    %cst_7 = arith.constant 0.000000e+00 : f32
    %18 = vector.broadcast %cst_7 : f32 to vector<8x1xf32>
    %19 = arith.subf %18, %5 : vector<8x1xf32>
    %20 = arith.mulf %19, %17 : vector<8x1xf32>
    %c0_8 = arith.constant 0 : index
    %c0_9 = arith.constant 0 : index
    %c0_10 = arith.constant 0 : index
    %21 = vector.load %arg2[%c0_8, %c0_9, %c0_10] : memref<1x8x256xf32, #tpu.memory_space<vmem>>, vector<1x8x256xf32>
    %22 = vector.shape_cast %21 : vector<1x8x256xf32> to vector<8x256xf32>
    %c0_11 = arith.constant 0 : index
    %c0_12 = arith.constant 0 : index
    %c0_13 = arith.constant 0 : index
    %23 = vector.load %arg3[%c0_11, %c0_12, %c0_13] : memref<1x8x256xf32, #tpu.memory_space<vmem>>, vector<1x8x256xf32>
    %24 = vector.shape_cast %23 : vector<1x8x256xf32> to vector<8x256xf32>
    %25 = vector.broadcast %17 : vector<8x1xf32> to vector<8x256xf32>
    %26 = arith.mulf %1, %25 : vector<8x256xf32>
    %27 = vector.broadcast %20 : vector<8x1xf32> to vector<8x256xf32>
    %28 = arith.addf %26, %27 : vector<8x256xf32>
    %cst_14 = arith.constant 1.000000e+00 : f32
    %29 = vector.broadcast %cst_14 : f32 to vector<8x256xf32>
    %30 = arith.addf %29, %22 : vector<8x256xf32>
    %31 = arith.mulf %28, %30 : vector<8x256xf32>
    %32 = arith.addf %31, %24 : vector<8x256xf32>
    %c0_15 = arith.constant 0 : index
    %c0_16 = arith.constant 0 : index
    %c0_17 = arith.constant 0 : index
    %33 = vector.load %arg4[%c0_15, %c0_16, %c0_17] : memref<1x8x256xf32, #tpu.memory_space<vmem>>, vector<1x8x256xf32>
    %34 = vector.shape_cast %33 : vector<1x8x256xf32> to vector<8x256xf32>
    %35 = vector.shape_cast %32 : vector<8x256xf32> to vector<1x8x256xf32>
    tpu.vector_store %arg4[%c0_15, %c0_16, %c0_17], %35 {strides = array<i32>} : memref<1x8x256xf32, #tpu.memory_space<vmem>>, vector<1x8x256xf32>,
    return
  }
  func.func @transform_0(%arg0: i32) -> (i32, i32, i32) {
    %c0_i32 = arith.constant 0 : i32
    %c0_i32_0 = arith.constant 0 : i32
    %c0_i32_1 = arith.constant 0 : i32
    return %arg0, %c0_i32, %c0_i32_0 : i32, i32, i32
  }
  func.func @transform_1(%arg0: i32) -> (i32, i32, i32) {
    %c0_i32 = arith.constant 0 : i32
    %c0_i32_0 = arith.constant 0 : i32
    %c0_i32_1 = arith.constant 0 : i32
    return %arg0, %c0_i32, %c0_i32_0 : i32, i32, i32
  }
  func.func @transform_2(%arg0: i32) -> (i32, i32, i32) {
    %c0_i32 = arith.constant 0 : i32
    %c0_i32_0 = arith.constant 0 : i32
    %c0_i32_1 = arith.constant 0 : i32
    return %arg0, %c0_i32, %c0_i32_0 : i32, i32, i32
  }
  func.func @transform_3(%arg0: i32) -> (i32, i32, i32) {
    %c0_i32 = arith.constant 0 : i32
    %c0_i32_0 = arith.constant 0 : i32
    %c0_i32_1 = arith.constant 0 : i32
    return %arg0, %c0_i32, %c0_i32_0 : i32, i32, i32
  }
}

</mosaic_0001>

<llo_original>
// kernel: tpu_custom_call.1
$region0: #{tpu_custom_call.1}
  #allocation0 [shape = 'u32[]', space=smem, size = 0x4, offset = 0x4, fixed_abs, tag = 'smem constant byte address 0x4 - core index']
  #allocation1 [shape = 'u32[144,128]{1,0:T(1,128)}', space=vmem, size = 0x12000, scoped, tag = 'internal scratch']
  %s0 = inlined_call_operand.hbm [shape: f32[2,8,256], index: 0, kind: input, shape index: {}]
  %s1 = inlined_call_operand.hbm [shape: f32[2,8,256], index: 1, kind: input, shape index: {}]
  %s2 = inlined_call_operand.hbm [shape: f32[2,8,256], index: 2, kind: input, shape index: {}]
  %s3 = inlined_call_operand.hbm [shape: f32[2,8,256], index: 3, kind: output, shape index: {}]
  %s4 = sld [smem:[#allocation0]]
  $region57: #{tpu_custom_call.1} parent=0
    _
  %s6 = ssub.s32 1, %s4
  %s7 = scalar_select 0, %s6, %s4
  $region1: #{tpu_custom_call.1} parent=0
    #allocation2 [shape = 'u8[16384]{0}', space=vmem, size = 0x4000, scoped, tag = 'input window, operand 0']
    #allocation3 [shape = 's32[2]{0}', space=sflag, size = 0x8, scoped, tag = 'scoped memory for tpu_custom_call.1']
    #allocation4 [shape = 's32[2]{0}', space=sflag, size = 0x8, scoped, tag = 'scoped memory for tpu_custom_call.1']
    #allocation5 [shape = 'u8[16384]{0}', space=vmem, size = 0x4000, scoped, tag = 'input window, operand 1']
    #allocation6 [shape = 's32[2]{0}', space=sflag, size = 0x8, scoped, tag = 'scoped memory for tpu_custom_call.1']
    #allocation7 [shape = 'u8[16384]{0}', space=vmem, size = 0x4000, scoped, tag = 'input window, operand 2']
    #allocation8 [shape = 'u8[16384]{0}', space=vmem, size = 0x4000, scoped, tag = 'output window, operand 0']
    %8 = vsyncpa [#allocation3], 0
    %s9 = scalar_lea.sflag [#allocation3], 1
    %10 = vsyncpa %s9, 0
    %11 = vsyncpa [#allocation6], 0
    %s12 = scalar_lea.sflag [#allocation6], 1
    %13 = vsyncpa %s12, 0
    %14 = vsyncpa [#allocation4], 0
    %s15 = scalar_lea.sflag [#allocation4], 1
    %16 = vsyncpa %s15, 0
    loop: start=0, step=1, limit=4
    $region2: #{tpu_custom_call.1} parent=1 // loop_pre_header
      _
    $region3: #{tpu_custom_call.1} parent=1 // loop_header
      %s18 = sphi 0, %s22
      %p19 = scmp.ge.s32.totalorder %s18, 4
      %s28 = sphi 0, %s30
      %s31 = sphi 0, %s28
      %s32 = sphi 0, %s31
      %s48 = sphi 0, %s32
      %s54 = sphi 0, %s56
      %s57 = sphi 0, %s54
      %s58 = sphi 0, %s57
      %s74 = sphi 0, %s58
      %s80 = sphi 0, %s82
      %s83 = sphi 0, %s80
      %s84 = sphi 0, %s83
      %s100 = sphi 0, %s84
      %s106 = sphi 0, %s108
      %s109 = sphi 0, %s106
      %s110 = sphi 0, %s109
      %s126 = sphi 0, %s110
    $region4: #{tpu_custom_call.1} parent=1 // loop_header_branch
      %21 = sbr.rel (%p19) target = $region8
    $region5: #{tpu_custom_call.1} parent=1 // loop_body
      %s23 = ssub.s32 %s18, 1
      %s24 = ssub.s32 %s18, 2
      %s25 = sadd.s32 %s18, 1
      %s26 = ssub.s32 %s18, %s25
      %p27 = scmp.eq.s32.totalorder %s26, 0
      %s29 = sadd.s32 %s28, 1
      %s30 = scalar_select %p27, %s28, %s29
      %p33 = pneg %p27
      %p34 = scmp.eq.s32.totalorder %s18, 1
      %p35 = por %p33, %p34
      %p36 = scmp.ne.s32.totalorder %s28, %s31
      %p37 = scmp.eq.s32.totalorder %s18, 0
      %p38 = por %p36, %p37
      %p39 = scmp.ne.s32.totalorder %s28, %s31
      %p40 = scmp.eq.s32.totalorder %s23, 1
      %p41 = por %p39, %p40
      %p42 = scmp.ne.s32.totalorder %s31, %s32
      %p43 = scmp.eq.s32.totalorder %s23, 0
      %p44 = por %p42, %p43
      %p45 = scmp.ne.s32.totalorder %s31, %s32
      %p46 = scmp.eq.s32.totalorder %s24, 1
      %p47 = por %p45, %p46
      %p49 = scmp.ne.s32.totalorder %s32, %s48
      %p50 = scmp.eq.s32.totalorder %s24, 0
      %p51 = por %p49, %p50
      %s52 = ssub.s32 %s18, %s25
      %p53 = scmp.eq.s32.totalorder %s52, 0
      %s55 = sadd.s32 %s54, 1
      %s56 = scalar_select %p53, %s54, %s55
      %p59 = pneg %p53
      %p60 = scmp.eq.s32.totalorder %s18, 1
      %p61 = por %p59, %p60
      %p62 = scmp.ne.s32.totalorder %s54, %s57
      %p63 = scmp.eq.s32.totalorder %s18, 0
      %p64 = por %p62, %p63
      %p65 = scmp.ne.s32.totalorder %s54, %s57
      %p66 = scmp.eq.s32.totalorder %s23, 1
      %p67 = por %p65, %p66
      %p68 = scmp.ne.s32.totalorder %s57, %s58
      %p69 = scmp.eq.s32.totalorder %s23, 0
      %p70 = por %p68, %p69
      %p71 = scmp.ne.s32.totalorder %s57, %s58
      %p72 = scmp.eq.s32.totalorder %s24, 1
      %p73 = por %p71, %p72
      %p75 = scmp.ne.s32.totalorder %s58, %s74
      %p76 = scmp.eq.s32.totalorder %s24, 0
      %p77 = por %p75, %p76
      %s78 = ssub.s32 %s18, %s25
      %p79 = scmp.eq.s32.totalorder %s78, 0
      %s81 = sadd.s32 %s80, 1
      %s82 = scalar_select %p79, %s80, %s81
      %p85 = pneg %p79
      %p86 = scmp.eq.s32.totalorder %s18, 1
      %p87 = por %p85, %p86
      %p88 = scmp.ne.s32.totalorder %s80, %s83
      %p89 = scmp.eq.s32.totalorder %s18, 0
      %p90 = por %p88, %p89
      %p91 = scmp.ne.s32.totalorder %s80, %s83
      %p92 = scmp.eq.s32.totalorder %s23, 1
      %p93 = por %p91, %p92
      %p94 = scmp.ne.s32.totalorder %s83, %s84
      %p95 = scmp.eq.s32.totalorder %s23, 0
      %p96 = por %p94, %p95
      %p97 = scmp.ne.s32.totalorder %s83, %s84
      %p98 = scmp.eq.s32.totalorder %s24, 1
      %p99 = por %p97, %p98
      %p101 = scmp.ne.s32.totalorder %s84, %s100
      %p102 = scmp.eq.s32.totalorder %s24, 0
      %p103 = por %p101, %p102
      %s104 = ssub.s32 %s18, %s25
      %p105 = scmp.eq.s32.totalorder %s104, 0
      %s107 = sadd.s32 %s106, 1
      %s108 = scalar_select %p105, %s106, %s107
      %p111 = pneg %p105
      %p112 = scmp.eq.s32.totalorder %s18, 1
      %p113 = por %p111, %p112
      %p114 = scmp.ne.s32.totalorder %s106, %s109
      %p115 = scmp.eq.s32.totalorder %s18, 0
      %p116 = por %p114, %p115
      %p117 = scmp.ne.s32.totalorder %s106, %s109
      %p118 = scmp.eq.s32.totalorder %s23, 1
      %p119 = por %p117, %p118
      %p120 = scmp.ne.s32.totalorder %s109, %s110
      %p121 = scmp.eq.s32.totalorder %s23, 0
      %p122 = por %p120, %p121
      %p123 = scmp.ne.s32.totalorder %s109, %s110
      %p124 = scmp.eq.s32.totalorder %s24, 1
      %p125 = por %p123, %p124
      %p127 = scmp.ne.s32.totalorder %s110, %s126
      %p128 = scmp.eq.s32.totalorder %s24, 0
      %p129 = por %p127, %p128
      %p130 = scmp.le.s32.totalorder 1, %s18
      %p131 = scmp.lt.s32.totalorder %s18, 3
      %p132 = pnand %p130, %p131
      %p133 = pneg %p132
      // Predicated region
      $region9: #{tpu_custom_call.1} parent=5 // pred_check
        _
      $region10: #{tpu_custom_call.1} parent=5 // pred_check_branch
        %135 = sbr.rel (%p132) target = $region12
      $region11: #{tpu_custom_call.1} parent=5 // pred_region
        %s136 = ssub.s32 %s18, 1
      $region12: #{tpu_custom_call.1} parent=5 // pred_fallthru
        _
      %p137 = scmp.lt.s32.totalorder %s18, 2
      // Predicated region
      $region13: #{tpu_custom_call.1} parent=5 // pred_check
        %p138 = pneg %p137
      $region14: #{tpu_custom_call.1} parent=5 // pred_check_branch
        %140 = sbr.rel (%p138) target = $region16
      $region15: #{tpu_custom_call.1} parent=5 // pred_region
        // Predicated region
        $region17: #{tpu_custom_call.1} parent=15 // pred_check
          %p141 = pneg %p38
        $region18: #{tpu_custom_call.1} parent=15 // pred_check_branch
          %143 = sbr.rel (%p141) target = $region20
        $region19: #{tpu_custom_call.1} parent=15 // pred_region
          %s144 = sand.u32 %s28, 1
          %s145 = scalar_lea.sflag [#allocation3], %s144
          %s146 = sand.u32 %s28, 1
          %s147 = smul.addr %s146, 16
          %s148 = scalar_lea.vmem [#allocation2], %s147
          %s150 = ssub.s32 256, 256
          %151 = vsyncadd %s145, %s150
          %s152 = smul.addr %s18, 2
          %s153 = smul.addr %s152, 128
          %s154 = scalar_lea.hbm %s0, %s153
          %s156 = sshll.u32 %s148, 4
          %s157 = int_to_ptr.vmem [resolvable:$true] %s156
          %159 = dma.hbm_to_vmem [thread:$0]  %s154, 256, %s157, %s145
        $region20: #{tpu_custom_call.1} parent=15 // pred_fallthru
          _
        // Predicated region
        $region21: #{tpu_custom_call.1} parent=15 // pred_check
          %p160 = pneg %p64
        $region22: #{tpu_custom_call.1} parent=15 // pred_check_branch
          %162 = sbr.rel (%p160) target = $region24
        $region23: #{tpu_custom_call.1} parent=15 // pred_region
          %s163 = sand.u32 %s18, 1
          %s164 = scalar_lea.sflag [#allocation6], %s163
          %s165 = sand.u32 %s54, 1
          %s166 = smul.addr %s165, 16
          %s167 = scalar_lea.vmem [#allocation5], %s166
          %s169 = ssub.s32 256, 256
          %170 = vsyncadd %s164, %s169
          %s171 = smul.addr %s18, 2
          %s172 = smul.addr %s171, 128
          %s173 = scalar_lea.hbm %s1, %s172
          %s175 = sshll.u32 %s167, 4
          %s176 = int_to_ptr.vmem [resolvable:$true] %s175
          %178 = dma.hbm_to_vmem [thread:$0]  %s173, 256, %s176, %s164
        $region24: #{tpu_custom_call.1} parent=15 // pred_fallthru
          _
        // Predicated region
        $region25: #{tpu_custom_call.1} parent=15 // pred_check
          %p179 = pneg %p90
        $region26: #{tpu_custom_call.1} parent=15 // pred_check_branch
          %181 = sbr.rel (%p179) target = $region28
        $region27: #{tpu_custom_call.1} parent=15 // pred_region
          %s182 = sand.u32 %s18, 1
          %s183 = scalar_lea.sflag [#allocation6], %s182
          %s184 = sand.u32 %s80, 1
          %s185 = smul.addr %s184, 16
          %s186 = scalar_lea.vmem [#allocation7], %s185
          %s188 = ssub.s32 256, 256
          %189 = vsyncadd %s183, %s188
          %s190 = smul.addr %s18, 2
          %s191 = smul.addr %s190, 128
          %s192 = scalar_lea.hbm %s2, %s191
          %s194 = sshll.u32 %s186, 4
          %s195 = int_to_ptr.vmem [resolvable:$true] %s194
          %197 = dma.hbm_to_vmem [thread:$0]  %s192, 256, %s195, %s183
        $region28: #{tpu_custom_call.1} parent=15 // pred_fallthru
          _
      $region16: #{tpu_custom_call.1} parent=5 // pred_fallthru
        _
      %p198 = scmp.le.s32.totalorder 1, %s18
      %p199 = scmp.lt.s32.totalorder %s18, 3
      %p200 = pnand %p198, %p199
      %p201 = pneg %p200
      // Predicated region
      $region29: #{tpu_custom_call.1} parent=5 // pred_check
        _
      $region30: #{tpu_custom_call.1} parent=5 // pred_check_branch
        %203 = sbr.rel (%p200) target = $region32
      $region31: #{tpu_custom_call.1} parent=5 // pred_region
        %s204 = ssub.s32 %s18, 1
        %s205 = sand.u32 %s31, 1
        %s206 = scalar_lea.sflag [#allocation3], %s205
        %s207 = sand.u32 %s31, 1
        %s208 = smul.addr %s207, 16
        %s209 = scalar_lea.vmem [#allocation2], %s208
        // Predicated region
        $region33: #{tpu_custom_call.1} parent=31 // pred_check
          %p210 = pneg %p44
        $region34: #{tpu_custom_call.1} parent=31 // pred_check_branch
          %212 = sbr.rel (%p210) target = $region36
        $region35: #{tpu_custom_call.1} parent=31 // pred_region
          %213 = dma.done %s206, 256
        $region36: #{tpu_custom_call.1} parent=31 // pred_fallthru
          _
        %s214 = sand.u32 %s23, 1
        %s215 = scalar_lea.sflag [#allocation6], %s214
        %s216 = sand.u32 %s57, 1
        %s217 = smul.addr %s216, 16
        %s218 = scalar_lea.vmem [#allocation5], %s217
        // Predicated region
        $region37: #{tpu_custom_call.1} parent=31 // pred_check
          %p219 = pneg %p70
        $region38: #{tpu_custom_call.1} parent=31 // pred_check_branch
          %221 = sbr.rel (%p219) target = $region40
        $region39: #{tpu_custom_call.1} parent=31 // pred_region
          %222 = dma.done %s215, 256
        $region40: #{tpu_custom_call.1} parent=31 // pred_fallthru
          _
        %s223 = sand.u32 %s23, 1
        %s224 = scalar_lea.sflag [#allocation6], %s223
        %s225 = sand.u32 %s83, 1
        %s226 = smul.addr %s225, 16
        %s227 = scalar_lea.vmem [#allocation7], %s226
        // Predicated region
        $region41: #{tpu_custom_call.1} parent=31 // pred_check
          %p228 = pneg %p96
        $region42: #{tpu_custom_call.1} parent=31 // pred_check_branch
          %230 = sbr.rel (%p228) target = $region44
        $region43: #{tpu_custom_call.1} parent=31 // pred_region
          %231 = dma.done %s224, 256
        $region44: #{tpu_custom_call.1} parent=31 // pred_fallthru
          _
        %s232 = sand.u32 %s31, 1
        %s233 = scalar_lea.sflag [#allocation3], %s232
        %s234 = sand.u32 %s31, 1
        %s235 = smul.addr %s234, 16
        %s236 = scalar_lea.vmem [#allocation2], %s235
        %p237 = pneg %p44
        %p238 = pneg %p41
        %s239 = sand.u32 %s23, 1
        %s240 = scalar_lea.sflag [#allocation6], %s239
        %s241 = sand.u32 %s57, 1
        %s242 = smul.addr %s241, 16
        %s243 = scalar_lea.vmem [#allocation5], %s242
        %p244 = pneg %p70
        %p245 = pneg %p67
        %s246 = sand.u32 %s23, 1
        %s247 = scalar_lea.sflag [#allocation6], %s246
        %s248 = sand.u32 %s83, 1
        %s249 = smul.addr %s248, 16
        %s250 = scalar_lea.vmem [#allocation7], %s249
        %p251 = pneg %p96
        %p252 = pneg %p93
        %p253 = pneg %p122
        %p254 = pneg %p119
        %s255 = sand.u32 %s109, 1
        %s256 = scalar_lea.sflag [#allocation4], %s255
        %s257 = sand.u32 %s109, 1
        %s258 = smul.addr %s257, 16
        %s259 = scalar_lea.vmem [#allocation8], %s258
        %v260 = vld [vmem:[%s209] sm:$0xff]
        %v261 = vld [vmem:[%s209 + $0x8] sm:$0xff]
        %v262 = vadd.f32 %v260, %v261
        %263 = vadd.xlane.f32.xlu0 %v262
        %v264 = vpop.xlane.xlu0 %263
        %v265 = vmul.f32 %v264, 0.00390625
        %v266 = vmul.f32 %v260, %v260
        %v267 = vmul.f32 %v261, %v261
        %v268 = vadd.f32 %v266, %v267
        %269 = vadd.xlane.f32.xlu0 %v268
        %v270 = vpop.xlane.xlu0 %269
        %v271 = vmul.f32 %v270, 0.00390625
        %v272 = vmul.f32 %v265, %v265
        %v273 = vsub.f32 %v271, %v272
        %v274 = vmax.f32 %v273, 0.0
        %v275 = vadd.f32 %v274, 1e-05
        %v276 = vrsqrt.pop %v275
        %v277 = vsub.f32 0.0, %v265
        %v278 = vmul.f32 %v277, %v276
        %v279 = vld [vmem:[%s218] sm:$0xff]
        %v280 = vld [vmem:[%s218 + $0x8] sm:$0xff]
        %v281 = vld [vmem:[%s227] sm:$0xff]
        %v282 = vld [vmem:[%s227 + $0x8] sm:$0xff]
        %v283 = vmul.f32 %v260, %v276
        %v284 = vmul.f32 %v261, %v276
        %v285 = vadd.f32 %v283, %v278
        %v286 = vadd.f32 %v284, %v278
        %v287 = vadd.f32 %v279, 1.0
        %v288 = vadd.f32 %v280, 1.0
        %v289 = vmul.f32 %v285, %v287
        %v290 = vmul.f32 %v286, %v288
        %v291 = vadd.f32 %v289, %v281
        %v292 = vadd.f32 %v290, %v282
        %293 = vst [vmem:[%s259] sm:$0xff] %v291
        %294 = vst [vmem:[%s259 + $0x8] sm:$0xff] %v292
        %s295 = sand.u32 %s109, 1
        %s296 = scalar_lea.sflag [#allocation4], %s295
        %s297 = sand.u32 %s109, 1
        %s298 = smul.addr %s297, 16
        %s299 = scalar_lea.vmem [#allocation8], %s298
        // Predicated region
        $region45: #{tpu_custom_call.1} parent=31 // pred_check
          %p300 = pneg %p119
        $region46: #{tpu_custom_call.1} parent=31 // pred_check_branch
          %302 = sbr.rel (%p300) target = $region48
        $region47: #{tpu_custom_call.1} parent=31 // pred_region
          %s304 = ssub.s32 256, 256
          %305 = vsyncadd %s296, %s304
          %s306 = smul.addr %s23, 2
          %s307 = smul.addr %s306, 128
          %s308 = scalar_lea.hbm %s3, %s307
          %s310 = sshll.u32 %s299, 4
          %s311 = int_to_ptr.vmem [resolvable:$true] %s310
          %313 = dma.vmem_to_hbm [thread:$0]  %s311, 256, %s308, %s296
        $region48: #{tpu_custom_call.1} parent=31 // pred_fallthru
          _
      $region32: #{tpu_custom_call.1} parent=5 // pred_fallthru
        _
      %p314 = scmp.le.s32.totalorder 2, %s18
      // Predicated region
      $region49: #{tpu_custom_call.1} parent=5 // pred_check
        %p315 = pneg %p314
      $region50: #{tpu_custom_call.1} parent=5 // pred_check_branch
        %317 = sbr.rel (%p315) target = $region52
      $region51: #{tpu_custom_call.1} parent=5 // pred_region
        %s318 = ssub.s32 %s18, 2
        // Predicated region
        $region53: #{tpu_custom_call.1} parent=51 // pred_check
          %p319 = pneg %p125
        $region54: #{tpu_custom_call.1} parent=51 // pred_check_branch
          %321 = sbr.rel (%p319) target = $region56
        $region55: #{tpu_custom_call.1} parent=51 // pred_region
          %s322 = sand.u32 %s110, 1
          %s323 = scalar_lea.sflag [#allocation4], %s322
          %s324 = sand.u32 %s110, 1
          %s325 = smul.addr %s324, 16
          %s326 = scalar_lea.vmem [#allocation8], %s325
          %327 = dma.done %s323, 256
        $region56: #{tpu_custom_call.1} parent=51 // pred_fallthru
          _
      $region52: #{tpu_custom_call.1} parent=5 // pred_fallthru
        _
    $region6: #{tpu_custom_call.1} parent=1 // loop_footer
      %s22 = sadd.s32 1, %s18
    $region7: #{tpu_custom_call.1} parent=1 // loop_footer_branch
      %17 = sbr.rel target = $region3
    $region8: #{tpu_custom_call.1} parent=1 // loop_exit
      _
    %328 = vsyncpa [#allocation3], 1
    %s329 = scalar_lea.sflag [#allocation3], 1
    %330 = vsyncpa %s329, 1
    %331 = vsyncpa [#allocation6], 1
    %s332 = scalar_lea.sflag [#allocation6], 1
    %333 = vsyncpa %s332, 1
    %334 = vsyncpa [#allocation4], 1
    %s335 = scalar_lea.sflag [#allocation4], 1
    %336 = vsyncpa %s335, 1

</llo_original>
